<compile_context>
chip_gen: v7x
topology: tpu7x:2x2x1
jax: 0.10.0
libtpu: 0.0.40
codegen_flags: <defaults>
</compile_context>

<pallas_src>
import functools

import numpy as np
import jax
import jax.numpy as jnp
from jax.experimental import pallas as pl
from jax.experimental.pallas import tpu as pltpu


_BIG = 1e30
_VMEM_LIMIT_CACHE = None


def _cdiv(a, b):
    return -(-int(a) // int(b))


def _round_up(x, m):
    return ((int(x) + m - 1) // m) * m


def _row_tile(n, tile):
    """Full-extent block when the array fits in one tile, else an aligned tile."""
    return int(n) if n <= tile else int(tile)


def _vmem_limit():
    """Generation-aware scoped-VMEM budget: ~3/4 of capacity, safe fallback."""
    global _VMEM_LIMIT_CACHE
    if _VMEM_LIMIT_CACHE is None:
        cap = 64 * 1024 * 1024                    # v7x has 64 MiB per TensorCore
        try:
            info = pltpu.get_tpu_info()
            cap = int(getattr(info, "vmem_capacity_bytes", cap))
        except Exception:
            pass
        _VMEM_LIMIT_CACHE = int(min(cap * 3 // 4, 96 * 1024 * 1024))
    return _VMEM_LIMIT_CACHE


def _bf16_round(x):
    """Host helper: round an array to bf16 precision (returned as f32)."""
    return np.asarray(jnp.asarray(np.asarray(x, np.float32)).astype(jnp.bfloat16)
                      .astype(jnp.float32))


# -----------------------------------------------------------------------------
# Kernel 1: fused Linear (BN folded into W, b) + ReLU.   out = relu(x @ W'.T + b')
# x stays f32 in HBM (no wrapper pad/cast copy); cast to bf16 in-kernel for the
# MXU, f32 accumulation.  Output last dim padded to a multiple of 128.
# -----------------------------------------------------------------------------
def _linear_relu_kernel(x_ref, wt_ref, b_ref, o_ref):
    x = x_ref[...].astype(jnp.bfloat16)
    y = jnp.dot(x, wt_ref[...], preferred_element_type=jnp.float32)
    o_ref[...] = jnp.maximum(y + b_ref[...], 0.0)


def prepare_linear(w, b, scale=None, shift=None):
    """One-time host prep: fold optional BN affine into (W, b), transpose, pad, cast."""
    w = np.asarray(w, np.float32)
    b = np.asarray(b, np.float32)
    if scale is not None:
        scale = np.asarray(scale, np.float32)
        shift = np.asarray(shift, np.float32)
        w = w * scale[:, None]
        b = b * scale + shift
    cout, cin = w.shape
    cout_p = _round_up(cout, 128)
    wt = np.zeros((cin, cout_p), np.float32)
    wt[:, :cout] = w.T
    bias = np.zeros((1, cout_p), np.float32)
    bias[0, :cout] = b
    return dict(wt=jnp.asarray(wt, jnp.bfloat16),
                bias=jnp.asarray(bias, jnp.float32),
                cin=cin, cout=cout, cout_p=cout_p)


def linear_relu(x, lp, *, tile_rows=1024):
    """relu(x @ W'.T + b') with BN folded into (W', b')."""
    x = jnp.asarray(x, jnp.float32)
    n, cin = x.shape
    assert cin == lp["cin"]
    cout_p = lp["cout_p"]

    tm = _row_tile(n, tile_rows)
    grid = _cdiv(n, tm)

    out = pl.pallas_call(
        _linear_relu_kernel,
        out_shape=jax.ShapeDtypeStruct((n, cout_p), jnp.float32),
        grid_spec=pltpu.PrefetchScalarGridSpec(
            num_scalar_prefetch=0,
            grid=(grid,),
            in_specs=[
                pl.BlockSpec((tm, cin), lambda i: (i, 0)),
                pl.BlockSpec((cin, cout_p), lambda i: (0, 0)),
                pl.BlockSpec((1, cout_p), lambda i: (0, 0)),
            ],
            out_specs=pl.BlockSpec((tm, cout_p), lambda i: (i, 0)),
        ),
        compiler_params=pltpu.CompilerParams(
            dimension_semantics=("parallel",),
            vmem_limit_bytes=_vmem_limit()),
    )(x, lp["wt"], lp["bias"])
    return out[:, :lp["cout"]]


# -----------------------------------------------------------------------------
# Kernel 2 (pass 1): brute-force batched KNN.  Grid = (query tiles [parallel],
# coarse tiles within the query tile's batch segment [arbitrary]).  The coarse
# axis is restricted via scalar-prefetched per-query-tile (first, last) coarse-
# tile indices; a running sorted top-k of (distance, global index) is carried
# in tiny VMEM scratch.  No feature data is touched in this pass.
# -----------------------------------------------------------------------------
def _knn_kernel(ts_ref, tl_ref, q_ref, pT_ref, qb_ref, dist_ref, idx_ref,
                d_sc, i_sc, *, k):
    i = pl.program_id(0)
    j = pl.program_id(1)
    nj = pl.num_programs(1)
    t0 = ts_ref[i]
    t_last = tl_ref[i]

    @pl.when(j == 0)
    def _init():
        d_sc[...] = jnp.full(d_sc.shape, _BIG, jnp.float32)
        i_sc[...] = jnp.zeros(i_sc.shape, jnp.int32)

    @pl.when(t0 + j <= t_last)
    def _compute():
        tm = pT_ref.shape[1]
        tile = jnp.minimum(t0 + j, t_last)     # coarse tile actually resident
        off = tile * tm

        q = q_ref[...]                                         # (tq, 3)  f32
        pT = pT_ref[...]                                       # (3, tm)  f32
        qq = jnp.sum(q * q, axis=1, keepdims=True)             # (tq, 1)
        pp = jnp.sum(pT * pT, axis=0, keepdims=True)           # (1, tm)
        cross = (q[:, 0:1] * pT[0:1, :]
                 + q[:, 1:2] * pT[1:2, :]
                 + q[:, 2:3] * pT[2:3, :])                     # (tq, tm)
        d = jnp.maximum(qq + pp - 2.0 * cross, 0.0)

        colf = jax.lax.broadcasted_iota(jnp.float32, d.shape, 1)
        qb = qb_ref[...]                                       # (tq, 2) int32
        lo = (qb[:, 0:1] - off).astype(jnp.float32)
        hi = (qb[:, 1:2] - off).astype(jnp.float32)
        valid = (colf >= lo) & (colf < hi)
        d = jnp.where(valid, d, _BIG)

        # pick the k nearest of this tile, merging each into the running sorted top-k
        for _ in range(k):
            dmin = jnp.min(d, axis=1, keepdims=True)           # (tq, 1)
            has = dmin < _BIG * 0.5
            selcol = jnp.min(jnp.where(d == dmin, colf, float(tm)),
                             axis=1, keepdims=True)            # (tq, 1)
            d = jnp.where(colf == selcol, _BIG, d)
            gidx = jnp.where(has, selcol.astype(jnp.int32) + off, 0)

            d_cur = [d_sc[s] for s in range(k)]
            i_cur = [i_sc[s] for s in range(k)]
            lt = [dmin < d_cur[s] for s in range(k)]
            for s in range(k - 1, 0, -1):
                d_sc[s] = jnp.where(lt[s],
                                    jnp.where(lt[s - 1], d_cur[s - 1], dmin),
                                    d_cur[s])
                i_sc[s] = jnp.where(lt[s],
                                    jnp.where(lt[s - 1], i_cur[s - 1], gidx),
                                    i_cur[s])
            d_sc[0] = jnp.where(lt[0], dmin, d_cur[0])
            i_sc[0] = jnp.where(lt[0], gidx, i_cur[0])

    @pl.when(j == nj - 1)
    def _finalize():
        dist_ref[...] = jnp.concatenate([d_sc[s] for s in range(k)], axis=1)
        idx_ref[...] = jnp.concatenate([i_sc[s] for s in range(k)], axis=1)


def knn_topk(queries, points, qbounds, *, k=3, tile_q=256, tile_m=1024):
    """Top-k (squared distance, index) of `points` for each query, per batch segment."""
    queries = jnp.asarray(queries, jnp.float32)
    points = jnp.asarray(points, jnp.float32)
    n = queries.shape[0]
    m = points.shape[0]

    tq = _row_tile(n, tile_q)
    tm = _row_tile(m, tile_m)
    n_tiles_q = _cdiv(n, tq)
    n_tiles_m = _cdiv(m, tm)

    # host-side per-query-tile coarse-tile ranges (segment restriction)
    qb_np = np.asarray(qbounds, np.int64).reshape(n, 2)
    pad = n_tiles_q * tq - n
    lo = qb_np[:, 0]
    hi = qb_np[:, 1]
    if pad:
        lo = np.concatenate([lo, np.full(pad, lo[-1], np.int64)])
        hi = np.concatenate([hi, np.full(pad, hi[-1], np.int64)])
    tile_lo = lo.reshape(n_tiles_q, tq).min(axis=1)
    tile_hi = hi.reshape(n_tiles_q, tq).max(axis=1)
    ts = (tile_lo // tm).astype(np.int32)
    tl = np.maximum(ts, (np.maximum(tile_hi, 1) - 1) // tm)
    tl = np.minimum(tl, n_tiles_m - 1).astype(np.int32)
    max_tiles = int((tl - ts).max()) + 1

    pT = points.T                                # (3, m) — tiny copy
    qb = jnp.asarray(qb_np, jnp.int32)

    dist, idx = pl.pallas_call(
        functools.partial(_knn_kernel, k=k),
        out_shape=(jax.ShapeDtypeStruct((n, k), jnp.float32),
                   jax.ShapeDtypeStruct((n, k), jnp.int32)),
        grid_spec=pltpu.PrefetchScalarGridSpec(
            num_scalar_prefetch=2,
            grid=(n_tiles_q, max_tiles),
            in_specs=[
                pl.BlockSpec((tq, 3), lambda i, j, ts, tl: (i, 0)),
                pl.BlockSpec((3, tm),
                             lambda i, j, ts, tl: (0, jnp.minimum(ts[i] + j, tl[i]))),
                pl.BlockSpec((tq, 2), lambda i, j, ts, tl: (i, 0)),
            ],
            out_specs=(pl.BlockSpec((tq, k), lambda i, j, ts, tl: (i, 0)),
                       pl.BlockSpec((tq, k), lambda i, j, ts, tl: (i, 0))),
            scratch_shapes=[
                pltpu.VMEM((k, tq, 1), jnp.float32),   # running top-k distances
                pltpu.VMEM((k, tq, 1), jnp.int32),     # running top-k indices
            ],
        ),
        compiler_params=pltpu.CompilerParams(
            dimension_semantics=("parallel", "arbitrary"),
            vmem_limit_bytes=_vmem_limit()),
    )(jnp.asarray(ts), jnp.asarray(tl), queries, pT, qb)
    return dist, idx


def interpolate_add(queries, points, feat, base, qbounds, *, k=3,
                    tile_q=256, tile_m=1024):
    """base + inverse-distance interpolation(points -> queries) of feat per segment."""
    feat = jnp.asarray(feat, jnp.float32)
    base = jnp.asarray(base, jnp.float32)
    m = feat.shape[0]
    dist, idx = knn_topk(queries, points, qbounds, k=k,
                         tile_q=tile_q, tile_m=tile_m)
    idx = jnp.clip(idx, 0, m - 1)
    rec = 1.0 / (dist + 1e-8)
    w = rec / jnp.sum(rec, axis=1, keepdims=True)
    gathered = jnp.take(feat, idx, axis=0)                     # (n, k, c)
    return base + jnp.sum(gathered * w[:, :, None], axis=1)


# -----------------------------------------------------------------------------
# Kernel 3: ragged per-batch mean pooling.  Grid = (channel slabs [parallel],
# row tiles [arbitrary]).  A (b_pad, tr) segment-selection matrix times the
# feature tile accumulates per-segment sums in the resident output block;
# per-segment counts come from the segment table in the finalize step.
# -----------------------------------------------------------------------------
def _segment_mean_kernel(seg_ref, feat_ref, o_ref, *, n_rows):
    ri = pl.program_id(1)
    tr = feat_ref.shape[0]
    bp = seg_ref.shape[0]

    @pl.when(ri == 0)
    def _init():
        o_ref[...] = jnp.zeros(o_ref.shape, jnp.float32)

    seg = seg_ref[...]
    rowg = jax.lax.broadcasted_iota(jnp.int32, (bp, tr), 1) + ri * tr
    sel = ((rowg >= seg[:, 0:1]) & (rowg < seg[:, 1:2])).astype(jnp.float32)

    rows = jax.lax.broadcasted_iota(jnp.int32, (tr, 1), 0) + ri * tr
    fvals = jnp.where(rows < n_rows, feat_ref[...], 0.0)   # mask boundary-block tail
    o_ref[...] += jnp.dot(sel, fvals, preferred_element_type=jnp.float32)

    @pl.when(ri == pl.num_programs(1) - 1)
    def _finalize():
        cnt = jnp.maximum((seg[:, 1:2] - seg[:, 0:1]).astype(jnp.float32), 1.0)
        o_ref[...] = o_ref[...] / cnt


def segment_mean(feat, row_splits, *, tile_rows=1024):
    feat = jnp.asarray(feat, jnp.float32)
    n, c = feat.shape
    rs = np.asarray(row_splits, np.int64)
    b = rs.shape[0] - 1
    b_pad = _round_up(b, 8)

    tr = _row_tile(n, tile_rows)
    n_row_tiles = _cdiv(n, tr)
    tc = min(512, c) if c % 128 == 0 else c       # full-dim slab when c is small/ragged
    n_col_tiles = _cdiv(c, tc)

    seg = np.zeros((b_pad, 2), np.int32)
    seg[:b, 0] = rs[:-1]
    seg[:b, 1] = rs[1:]

    out = pl.pallas_call(
        functools.partial(_segment_mean_kernel, n_rows=n),
        out_shape=jax.ShapeDtypeStruct((b_pad, c), jnp.float32),
        grid_spec=pltpu.PrefetchScalarGridSpec(
            num_scalar_prefetch=0,
            grid=(n_col_tiles, n_row_tiles),
            in_specs=[
                pl.BlockSpec((b_pad, 2), lambda ci, ri: (0, 0)),
                pl.BlockSpec((tr, tc), lambda ci, ri: (ri, ci)),
            ],
            out_specs=pl.BlockSpec((b_pad, tc), lambda ci, ri: (0, ci)),
        ),
        compiler_params=pltpu.CompilerParams(
            dimension_semantics=("parallel", "arbitrary"),
            vmem_limit_bytes=_vmem_limit()),
    )(jnp.asarray(seg), feat)
    return out[:b]


# -----------------------------------------------------------------------------
# TransitionUp forward (both branches of the PyTorch module)
# -----------------------------------------------------------------------------
def prepare_transition_up_params(params, *, has_pxo2):
    """One-time host prep: fold BN, transpose, pad, cast to bf16."""
    if has_pxo2:
        return dict(
            lin1=prepare_linear(params["w1"], params["b1"],
                                params["scale1"], params["shift1"]),
            lin2=prepare_linear(params["w2"], params["b2"],
                                params["scale2"], params["shift2"]))
    return dict(
        lin1=prepare_linear(params["w1"], params["b1"],
                            params["scale1"], params["shift1"]),
        lin2=prepare_linear(params["w2"], params["b2"]))     # linear2 has no BN here


def transition_up_forward(prep, pxo1, pxo2=None, *, k=3):
    if pxo2 is None:
        # last decoder layer: concat each point's feature with a per-batch pooled
        # feature processed by linear2 (+ReLU), then linear1 (+BN+ReLU).
        _, feat, row_splits = pxo1
        rs = np.asarray(row_splits, np.int64)
        nb = rs.shape[0] - 1
        pooled = segment_mean(feat, rs)                           # (b, c)
        g = linear_relu(pooled, prep["lin2"])                     # Linear + ReLU
        counts = np.diff(rs)
        batch_idx = jnp.asarray(np.repeat(np.arange(nb), counts), jnp.int32)
        feat_cat = jnp.concatenate(
            [jnp.asarray(feat, jnp.float32), jnp.take(g, batch_idx, axis=0)],
            axis=1)
        return linear_relu(feat_cat, prep["lin1"])
    point1, feat1, rs1 = pxo1
    point2, feat2, rs2 = pxo2
    f1 = linear_relu(feat1, prep["lin1"])
    f2 = linear_relu(feat2, prep["lin2"])
    rs1 = np.asarray(rs1, np.int64)
    rs2 = np.asarray(rs2, np.int64)
    qb_batch = np.repeat(np.arange(rs1.shape[0] - 1), np.diff(rs1))
    qbounds = np.stack([rs2[qb_batch], rs2[qb_batch + 1]],
                       axis=1).astype(np.int32)                   # (n1, 2)
    return interpolate_add(point1, point2, f2, f1, qbounds, k=k)


# -----------------------------------------------------------------------------
# deterministic parameter init (mimics nn.Linear default + eval-mode BN folding)
# -----------------------------------------------------------------------------
def init_linear(key, cin, cout):
    k1, k2 = jax.random.split(key)
    bound = 1.0 / np.sqrt(cin)
    w = jax.random.uniform(k1, (cout, cin), jnp.float32, -bound, bound)
    b = jax.random.uniform(k2, (cout,), jnp.float32, -bound, bound)
    return w, b


def init_bn(key, c, eps=1e-5):
    k1, k2, k3, k4 = jax.random.split(key, 4)
    gamma = jax.random.uniform(k1, (c,), jnp.float32, 0.5, 1.5)
    beta = 0.1 * jax.random.normal(k2, (c,), jnp.float32)
    rmean = 0.1 * jax.random.normal(k3, (c,), jnp.float32)
    rvar = jax.random.uniform(k4, (c,), jnp.float32, 0.5, 1.5)
    scale = gamma / jnp.sqrt(rvar + eps)
    shift = beta - rmean * scale
    return scale, shift


# -----------------------------------------------------------------------------
# numpy references (same math, bf16-rounded matmul operands to mirror kernels)
# -----------------------------------------------------------------------------
def _ref_linear_relu(x, lp):
    wt = np.asarray(jnp.asarray(lp["wt"], jnp.float32))[:, :lp["cout"]]
    b = np.asarray(lp["bias"])[0, :lp["cout"]]
    return np.maximum(_bf16_round(x) @ wt + b, 0.0)


def ref_branch2(prep, pxo1, pxo2, k=3):
    point1, feat1, rs1 = pxo1
    point2, feat2, rs2 = pxo2
    f1 = _ref_linear_relu(feat1, prep["lin1"])
    f2 = _ref_linear_relu(feat2, prep["lin2"])
    q = np.asarray(point1, np.float32)
    pts = np.asarray(point2, np.float32)
    rs1 = np.asarray(rs1, np.int64)
    rs2 = np.asarray(rs2, np.int64)
    qb = np.repeat(np.arange(rs1.shape[0] - 1), np.diff(rs1))
    d = (q * q).sum(1, keepdims=True) + (pts * pts).sum(1)[None, :] - 2.0 * q @ pts.T
    d = np.maximum(d, 0.0)
    col = np.arange(pts.shape[0])[None, :]
    valid = (col >= rs2[qb][:, None]) & (col < rs2[qb + 1][:, None])
    d = np.where(valid, d, 1e30)
    idx = np.argsort(d, axis=1, kind="stable")[:, :k]
    dist = np.take_along_axis(d, idx, axis=1)
    rec = 1.0 / (dist + 1e-8)
    wgt = rec / rec.sum(1, keepdims=True)
    interp = np.zeros_like(f1)
    for i in range(k):
        interp += f2[idx[:, i]] * wgt[:, i:i + 1]
    return f1 + interp


def ref_branch1(prep, feat, row_splits):
    feat = np.asarray(feat, np.float32)
    rs = np.asarray(row_splits, np.int64)
    chunks = []
    for i in range(rs.shape[0] - 1):
        fb = feat[rs[i]:rs[i + 1]]
        cnt = rs[i + 1] - rs[i]
        pooled = fb.sum(0, keepdims=True) / cnt
        g = _ref_linear_relu(pooled, prep["lin2"])
        chunks.append(np.concatenate([fb, np.repeat(g, cnt, axis=0)], axis=1))
    cat = np.concatenate(chunks, 0)
    return _ref_linear_relu(cat, prep["lin1"])


# -----------------------------------------------------------------------------
if __name__ == "__main__":
    key = jax.random.PRNGKey(0)
    ks = jax.random.split(key, 16)

    # ---------- branch with pxo2 (TransitionUp(in_planes=8, out_planes=16)) ----------
    in_planes, out_planes = 8, 16
    n1, n2 = 32, 16                               # fine / coarse point counts, batch b=2
    rs1 = np.array([0, 16, 32], np.int32)
    rs2 = np.array([0, 8, 16], np.int32)

    w1, b1 = init_linear(ks[0], out_planes, out_planes)
    s1, sh1 = init_bn(ks[1], out_planes)
    w2, b2 = init_linear(ks[2], in_planes, out_planes)
    s2, sh2 = init_bn(ks[3], out_planes)
    params2 = dict(w1=w1, b1=b1, scale1=s1, shift1=sh1,
                   w2=w2, b2=b2, scale2=s2, shift2=sh2)
    prep2 = prepare_transition_up_params(params2, has_pxo2=True)

    point1 = jax.random.normal(ks[4], (n1, 3), jnp.float32)
    feat1 = jax.random.normal(ks[5], (n1, out_planes), jnp.float32)
    point2 = jax.random.normal(ks[6], (n2, 3), jnp.float32)
    feat2 = jax.random.normal(ks[7], (n2, in_planes), jnp.float32)

    out2 = transition_up_forward(prep2, (point1, feat1, rs1), (point2, feat2, rs2))
    out2 = jax.block_until_ready(out2)
    ref2 = ref_branch2(prep2,
                       (np.asarray(point1), np.asarray(feat1), rs1),
                       (np.asarray(point2), np.asarray(feat2), rs2))
    np.testing.assert_allclose(np.asarray(out2), ref2, rtol=2e-2, atol=2e-2)

    # ---------- branch with pxo2=None (TransitionUp(in_planes=8)) ----------
    c = 8
    n = 32
    rs = np.array([0, 16, 32], np.int32)
    w1n, b1n = init_linear(ks[8], 2 * c, c)
    s1n, sh1n = init_bn(ks[9], c)
    w2n, b2n = init_linear(ks[10], c, c)
    params1 = dict(w1=w1n, b1=b1n, scale1=s1n, shift1=sh1n, w2=w2n, b2=b2n)
    prep1 = prepare_transition_up_params(params1, has_pxo2=False)

    pointn = jax.random.normal(ks[11], (n, 3), jnp.float32)
    featn = jax.random.normal(ks[12], (n, c), jnp.float32)

    out1 = transition_up_forward(prep1, (pointn, featn, rs), None)
    out1 = jax.block_until_ready(out1)
    ref1 = ref_branch1(prep1, featn, rs)
    np.testing.assert_allclose(np.asarray(out1), ref1, rtol=2e-2, atol=2e-2)

    print("KERNEL_OK")
</pallas_src>

<mosaic_0001>
module attributes {stable_mosaic.version = 11 : i64} {
  func.func @_linear_relu_kernel(%arg0: i32, %arg1: memref<32x16xf32, #tpu.memory_space<vmem>>, %arg2: memref<16x128xbf16, #tpu.memory_space<vmem>>, %arg3: memref<1x128xf32, #tpu.memory_space<vmem>>, %arg4: memref<32x128xf32, #tpu.memory_space<vmem>>) attributes {dimension_semantics = [#tpu.dimension_semantics<parallel>], iteration_bounds = array<i64: 1>, scalar_prefetch = 0 : i64, scratch_operands = 0 : i64, tpu.core_type = #tpu.core_type<tc>, window_params = [{transform_indices = @transform_0, window_bounds = array<i64: 32, 16>}, {pipeline_mode = #tpu.pipeline_mode<synchronous>, transform_indices = @transform_1, window_bounds = array<i64: 16, 128>}, {pipeline_mode = #tpu.pipeline_mode<synchronous>, transform_indices = @transform_2, window_bounds = array<i64: 1, 128>}, {transform_indices = @transform_3, window_bounds = array<i64: 32, 128>}]} {
    %c0 = arith.constant 0 : index
    %c0_0 = arith.constant 0 : index
    %0 = vector.load %arg1[%c0, %c0_0] : memref<32x16xf32, #tpu.memory_space<vmem>>, vector<32x16xf32>
    %1 = arith.truncf %0 : vector<32x16xf32> to vector<32x16xbf16>
    %c0_1 = arith.constant 0 : index
    %c0_2 = arith.constant 0 : index
    %2 = vector.load %arg2[%c0_1, %c0_2] : memref<16x128xbf16, #tpu.memory_space<vmem>>, vector<16x128xbf16>
    %cst = arith.constant dense<0.000000e+00> : vector<32x128xf32>
    %3 = tpu.matmul %1, %2, %cst {dimension_numbers = #tpu.dot_dimension_numbers<[1], [0], [0], [1], [0, 0, 1, 1], [], []>} : vector<32x16xbf16>, vector<16x128xbf16>, vector<32x128xf32> -> vector<32x128xf32>
    %c0_3 = arith.constant 0 : index
    %c0_4 = arith.constant 0 : index
    %4 = vector.load %arg3[%c0_3, %c0_4] : memref<1x128xf32, #tpu.memory_space<vmem>>, vector<1x128xf32>
    %5 = vector.broadcast %4 : vector<1x128xf32> to vector<32x128xf32>
    %6 = arith.addf %3, %5 : vector<32x128xf32>
    %cst_5 = arith.constant 0.000000e+00 : f32
    %7 = vector.broadcast %cst_5 : f32 to vector<32x128xf32>
    %8 = arith.maximumf %6, %7 : vector<32x128xf32>
    %c0_6 = arith.constant 0 : index
    %c0_7 = arith.constant 0 : index
    %9 = vector.load %arg4[%c0_6, %c0_7] : memref<32x128xf32, #tpu.memory_space<vmem>>, vector<32x128xf32>
    tpu.vector_store %arg4[%c0_6, %c0_7], %8 {strides = array<i32>} : memref<32x128xf32, #tpu.memory_space<vmem>>, vector<32x128xf32>,
    return
  }
  func.func @transform_0(%arg0: i32) -> (i32, i32) {
    %c0_i32 = arith.constant 0 : i32
    %c0_i32_0 = arith.constant 0 : i32
    return %arg0, %c0_i32 : i32, i32
  }
  func.func @transform_1(%arg0: i32) -> (i32, i32) {
    %c0_i32 = arith.constant 0 : i32
    %c0_i32_0 = arith.constant 0 : i32
    %c0_i32_1 = arith.constant 0 : i32
    return %c0_i32, %c0_i32_0 : i32, i32
  }
  func.func @transform_2(%arg0: i32) -> (i32, i32) {
    %c0_i32 = arith.constant 0 : i32
    %c0_i32_0 = arith.constant 0 : i32
    %c0_i32_1 = arith.constant 0 : i32
    return %c0_i32, %c0_i32_0 : i32, i32
  }
  func.func @transform_3(%arg0: i32) -> (i32, i32) {
    %c0_i32 = arith.constant 0 : i32
    %c0_i32_0 = arith.constant 0 : i32
    return %arg0, %c0_i32 : i32, i32
  }
}

</mosaic_0001>

<llo_original>
// kernel: tpu_custom_call.1
$region0: #{tpu_custom_call.1}
  #allocation0 [shape = 'u32[]', space=smem, size = 0x4, offset = 0x4, fixed_abs, tag = 'smem constant byte address 0x4 - core index']
  #allocation1 [shape = 'u32[144,128]{1,0:T(1,128)}', space=vmem, size = 0x12000, scoped, tag = 'internal scratch']
  %s0 = inlined_call_operand.vmem [shape: f32[32,16], index: 0, kind: input, shape index: {}]
  %s1 = inlined_call_operand.vmem [shape: bf16[16,128], index: 1, kind: input, shape index: {}]
  %s2 = inlined_call_operand.vmem [shape: f32[1,128], index: 2, kind: input, shape index: {}]
  %s3 = inlined_call_operand.hbm [shape: f32[32,128], index: 3, kind: output, shape index: {}]
  %s4 = sld [smem:[#allocation0]]
  $region22: #{tpu_custom_call.1} parent=0
    _
  %s6 = ssub.s32 1, %s4
  %s7 = scalar_select 0, %s6, %s4
  $region1: #{tpu_custom_call.1} parent=0
    #allocation2 [shape = 'u8[16384]{0}', space=vmem, size = 0x4000, scoped, tag = 'output window, operand 0, single buffered']
    #allocation3 [shape = 's32[1]{0}', space=sflag, size = 0x4, scoped, tag = 'scoped memory for tpu_custom_call.1']
    %8 = vsyncpa [#allocation3], 0
    // Predicated region
    $region2: #{tpu_custom_call.1} parent=1 // pred_check
      _
    $region3: #{tpu_custom_call.1} parent=1 // pred_check_branch
      %10 = sbr.rel (0) target = $region5
    $region4: #{tpu_custom_call.1} parent=1 // pred_region
      _
    $region5: #{tpu_custom_call.1} parent=1 // pred_fallthru
      _
    // Predicated region
    $region6: #{tpu_custom_call.1} parent=1 // pred_check
      _
    $region7: #{tpu_custom_call.1} parent=1 // pred_check_branch
      %12 = sbr.rel (0) target = $region9
    $region8: #{tpu_custom_call.1} parent=1 // pred_region
      _
    $region9: #{tpu_custom_call.1} parent=1 // pred_fallthru
      _
    // Predicated region
    $region10: #{tpu_custom_call.1} parent=1 // pred_check
      _
    $region11: #{tpu_custom_call.1} parent=1 // pred_check_branch
      %14 = sbr.rel (0) target = $region13
    $region12: #{tpu_custom_call.1} parent=1 // pred_region
      _
    $region13: #{tpu_custom_call.1} parent=1 // pred_fallthru
      _
    %v16 = vld [vmem:[%s0] sm:$0xff]
    %v17 = vld [vmem:[%s0 + $0x8] sm:$0xff]
    %v18 = vld [vmem:[%s0 + $0x10] sm:$0xff]
    %v19 = vld [vmem:[%s0 + $0x18] sm:$0xff]
    %v20 = vpack.c.bf16 %v17, %v16
    %v21 = vpack.c.bf16 %v19, %v18
    %v22 = vld [vmem:[%s1] sm:$0xf]
    %v23 = vld [vmem:[%s1 + $0x4] sm:$0xf]
    %v24 = vld [vmem:[%s2] sm:$0x1]
    %v26 = vlaneseq
    %v27 = vshrl.u32 %v26, 7
    %v28 = vsub.s32 0, %v27
    %v29 = vrot.slane %v24, %v28
    %v33 = vunpack.c.l.b16 %v22
    %v34 = vunpack.c.l.b16 %v23
    %v35 = vpack.c.b16 %v34, %v33
    %vm37 = vcmask 130048
    %v39 = vsel %vm37, %v20, 0
    %v42 = vsel %vm37, %v21, 0
    %44 = vmatprep.subr.bf16.mxu0 0
    %45 = vmatpush1.bf16.msra.mxu0 %v35
    %46 = vmatprep.subr.bf16.mxu0 0
    %47 = vmatpush1.bf16.msra.mxu0 0
    %48 = vmatprep.subr.bf16.mxu0 0
    %49 = vmatpush1.bf16.msra.mxu0 0
    %50 = vmatprep.subr.bf16.mxu0 0
    %51 = vmatpush1.bf16.msra.mxu0 0
    %52 = vmatprep.subr.bf16.mxu0 0
    %53 = vmatpush1.bf16.msra.mxu0 0
    %54 = vmatprep.subr.bf16.mxu0 0
    %55 = vmatpush1.bf16.msra.mxu0 0
    %56 = vmatprep.subr.bf16.mxu0 0
    %57 = vmatpush1.bf16.msra.mxu0 0
    %58 = vmatprep.subr.bf16.mxu0 0
    %59 = vmatpush1.bf16.msra.mxu0 0
    %60 = vmatprep.subr.bf16.mxu0 0
    %61 = vmatpush1.bf16.msra.mxu0 0
    %62 = vmatprep.subr.bf16.mxu0 0
    %63 = vmatpush1.bf16.msra.mxu0 0
    %64 = vmatprep.subr.bf16.mxu0 0
    %65 = vmatpush1.bf16.msra.mxu0 0
    %66 = vmatprep.subr.bf16.mxu0 0
    %67 = vmatpush1.bf16.msra.mxu0 0
    %68 = vmatprep.subr.bf16.mxu0 0
    %69 = vmatpush1.bf16.msra.mxu0 0
    %70 = vmatprep.subr.bf16.mxu0 0
    %71 = vmatpush1.bf16.msra.mxu0 0
    %72 = vmatprep.subr.bf16.mxu0 0
    %73 = vmatpush1.bf16.msra.mxu0 0
    %74 = vmatprep.subr.bf16.mxu0 0
    %75 = vmatpush1.bf16.msra.mxu0 0
    %76 = vmatprep.mubr.bf16.mxu0 0
    %77 = vmatmul.mubr.bf16.gmra.mrb[0].mxu0 %v39
    %v78 = vpop.f32.mrb[0].mxu0
    %v79 = vadd.f32 %v29, %v78
    %v80 = vpop.f32.mrb[0].mxu0
    %v81 = vpop.f32.mrb[0].mxu0
    %v82 = vadd.f32 %v29, %v81
    %v83 = vpop.f32.mrb[0].mxu0
    %84 = vmatprep.mubr.bf16.mxu0 0
    %85 = vmatmul.mubr.bf16.gmra.mrb[0].mxu0 %v42
    %v86 = vpop.f32.mrb[0].mxu0
    %v87 = vadd.f32 %v29, %v86
    %v88 = vpop.f32.mrb[0].mxu0
    %v89 = vpop.f32.mrb[0].mxu0
    %v90 = vadd.f32 %v29, %v89
    %v91 = vpop.f32.mrb[0].mxu0
    %92 = vdwg.mxu0
    %v93 = vmax.f32 %v79, 0.0
    %v94 = vmax.f32 %v82, 0.0
    %v95 = vmax.f32 %v87, 0.0
    %v96 = vmax.f32 %v90, 0.0
    %97 = vst [vmem:[#allocation2] sm:$0xff] %v93
    %98 = vst [vmem:[#allocation2 + $0x8] sm:$0xff] %v94
    %99 = vst [vmem:[#allocation2 + $0x10] sm:$0xff] %v95
    %100 = vst [vmem:[#allocation2 + $0x18] sm:$0xff] %v96
    // Predicated region
    $region14: #{tpu_custom_call.1} parent=1 // pred_check
      _
    $region15: #{tpu_custom_call.1} parent=1 // pred_check_branch
      %102 = sbr.rel (0) target = $region17
    $region16: #{tpu_custom_call.1} parent=1 // pred_region
      %s104 = ssub.s32 512, 512
      %105 = vsyncadd [#allocation3], %s104
      %s106 = sshll.u32 [#allocation2], 4
      %s107 = int_to_ptr.vmem [resolvable:$true] %s106
      %112 = dma.vmem_to_hbm [thread:$0]  %s107, 512, %s3, [#allocation3], 128, 128, 8
    $region17: #{tpu_custom_call.1} parent=1 // pred_fallthru
      _
    // Predicated region
    $region18: #{tpu_custom_call.1} parent=1 // pred_check
      _
    $region19: #{tpu_custom_call.1} parent=1 // pred_check_branch
      %114 = sbr.rel (0) target = $region21
    $region20: #{tpu_custom_call.1} parent=1 // pred_region
      %115 = dma.done [#allocation3], 512
    $region21: #{tpu_custom_call.1} parent=1 // pred_fallthru
      _
    %116 = vsyncpa [#allocation3], 1

</llo_original>
